<compile_context>
chip_gen: v7x
topology: tpu7x:2x2x1
jax: 0.10.0
libtpu: 0.0.40
codegen_flags: <defaults>
</compile_context>

<pallas_src>
import math

import jax
import jax.numpy as jnp
from jax.experimental import pallas as pl
from jax.experimental.pallas import tpu as pltpu


def _copy_kernel(x_ref, o_ref):
    # Pure data movement: the flip is expressed in the index_maps, not here.
    o_ref[...] = x_ref[...]


def _sublane_pack(dtype):
    # Minimum legal sublane-tile multiple: 8 for 4-byte, 16 for 2-byte,
    # 32 for 1-byte dtypes (sub-32-bit types pack along sublanes).
    return max(8, 32 // jnp.dtype(dtype).itemsize)


def flip_layer(x, *, target_block_bytes=4 << 20):
    """Equivalent of torch.flip(x, dims=[1]) for an N-D tensor (N >= 2), e.g. NCHW."""
    orig_shape = x.shape
    B, C = orig_shape[0], orig_shape[1]
    F = int(math.prod(orig_shape[2:]))  # () -> 1 for 2-D inputs
    itemsize = jnp.dtype(x.dtype).itemsize

    # ---- Lane/sublane-dense view: (B, C, S, 128) --------------------------
    LANES = 128
    Fp = ((F + LANES - 1) // LANES) * LANES
    xf = x.reshape(B, C, F)
    if Fp != F:
        xf = jnp.pad(xf, ((0, 0), (0, 0), (0, Fp - F)))
    S = Fp // LANES
    xv = xf.reshape(B, C, S, LANES)

    # ---- Choose the sublane tile: multiple of the packing factor ----------
    pack = _sublane_pack(x.dtype)
    row_bytes = B * LANES * itemsize  # bytes per sublane-row of a block
    budget_rows = max(pack, (target_block_bytes // row_bytes) // pack * pack)
    # Either the full (possibly small / non-multiple) dim, or a multiple of `pack`.
    tile_s = S if S <= budget_rows else budget_rows
    n_s = pl.cdiv(S, tile_s)  # Pallas handles the ragged last block
    block_bytes = B * tile_s * LANES * itemsize

    # in + out, double-buffered => ~4x block; leave slack, stay under v7x's 64 MiB.
    vmem_limit = int(min(64 << 20, max(32 << 20, 4 * block_bytes + (4 << 20))))

    out = pl.pallas_call(
        _copy_kernel,
        out_shape=jax.ShapeDtypeStruct((B, C, S, LANES), x.dtype),
        grid=(n_s, C),
        # Input block at output-channel c reads source channel C-1-c.
        in_specs=[pl.BlockSpec((B, 1, tile_s, LANES),
                               lambda s, c: (0, C - 1 - c, s, 0))],
        out_specs=pl.BlockSpec((B, 1, tile_s, LANES),
                               lambda s, c: (0, c, s, 0)),
        compiler_params=pltpu.CompilerParams(
            dimension_semantics=("parallel", "parallel"),
            vmem_limit_bytes=vmem_limit),
        cost_estimate=pl.CostEstimate(
            flops=0,
            transcendentals=0,
            bytes_accessed=2 * B * C * Fp * itemsize),
    )(xv)

    out = out.reshape(B, C, Fp)
    if Fp != F:
        out = out[:, :, :F]
    return out.reshape(orig_shape)


if __name__ == "__main__":
    key = jax.random.PRNGKey(0)
    # Small NCHW input: batch=2, channels=4, spatial=16x16
    x = jax.random.normal(key, (2, 4, 16, 16), dtype=jnp.float32)

    y = jax.block_until_ready(flip_layer(x))

    ref = jnp.flip(x, axis=1)
    assert y.shape == x.shape and y.dtype == x.dtype
    assert jnp.array_equal(y, ref)

    print("KERNEL_OK")
</pallas_src>

<mosaic_0001>
module attributes {stable_mosaic.version = 11 : i64} {
  func.func @_copy_kernel(%arg0: i32, %arg1: i32, %arg2: memref<2x1x2x128xf32, #tpu.memory_space<vmem>>, %arg3: memref<2x1x2x128xf32, #tpu.memory_space<vmem>>) attributes {dimension_semantics = [#tpu.dimension_semantics<parallel>, #tpu.dimension_semantics<parallel>], iteration_bounds = array<i64: 1, 4>, scalar_prefetch = 0 : i64, scratch_operands = 0 : i64, tpu.core_type = #tpu.core_type<tc>, window_params = [{transform_indices = @transform_0, window_bounds = array<i64: 2, 1, 2, 128>}, {transform_indices = @transform_1, window_bounds = array<i64: 2, 1, 2, 128>}]} {
    %c0 = arith.constant 0 : index
    %c0_0 = arith.constant 0 : index
    %c0_1 = arith.constant 0 : index
    %c0_2 = arith.constant 0 : index
    %0 = vector.load %arg2[%c0, %c0_0, %c0_1, %c0_2] : memref<2x1x2x128xf32, #tpu.memory_space<vmem>>, vector<2x1x2x128xf32>
    %c0_3 = arith.constant 0 : index
    %c0_4 = arith.constant 0 : index
    %c0_5 = arith.constant 0 : index
    %c0_6 = arith.constant 0 : index
    %1 = vector.load %arg3[%c0_3, %c0_4, %c0_5, %c0_6] : memref<2x1x2x128xf32, #tpu.memory_space<vmem>>, vector<2x1x2x128xf32>
    tpu.vector_store %arg3[%c0_3, %c0_4, %c0_5, %c0_6], %0 {strides = array<i32>} : memref<2x1x2x128xf32, #tpu.memory_space<vmem>>, vector<2x1x2x128xf32>,
    return
  }
  func.func @transform_0(%arg0: i32, %arg1: i32) -> (i32, i32, i32, i32) {
    %c3_i32 = arith.constant 3 : i32
    %0 = arith.subi %c3_i32, %arg1 : i32
    %c0_i32 = arith.constant 0 : i32
    %c0_i32_0 = arith.constant 0 : i32
    %c0_i32_1 = arith.constant 0 : i32
    return %c0_i32, %0, %arg0, %c0_i32_0 : i32, i32, i32, i32
  }
  func.func @transform_1(%arg0: i32, %arg1: i32) -> (i32, i32, i32, i32) {
    %c0_i32 = arith.constant 0 : i32
    %c0_i32_0 = arith.constant 0 : i32
    %c0_i32_1 = arith.constant 0 : i32
    return %c0_i32, %arg1, %arg0, %c0_i32_0 : i32, i32, i32, i32
  }
}

</mosaic_0001>

<llo_original>
// kernel: tpu_custom_call.1
$region0: #{tpu_custom_call.1}
  #allocation0 [shape = 'u32[]', space=smem, size = 0x4, offset = 0x4, fixed_abs, tag = 'smem constant byte address 0x4 - core index']
  #allocation1 [shape = 'u32[144,128]{1,0:T(1,128)}', space=vmem, size = 0x12000, scoped, tag = 'internal scratch']
  %s0 = inlined_call_operand.hbm [shape: f32[2,4,2,128], index: 0, kind: input, shape index: {}]
  %s1 = inlined_call_operand.hbm [shape: f32[2,4,2,128], index: 1, kind: output, shape index: {}]
  %s2 = sld [smem:[#allocation0]]
  $region41: #{tpu_custom_call.1} parent=0
    _
  %s4 = ssub.s32 1, %s2
  %s5 = scalar_select 0, %s4, %s2
  $region1: #{tpu_custom_call.1} parent=0
    #allocation2 [shape = 'u8[4096]{0}', space=vmem, size = 0x1000, scoped, tag = 'input window, operand 0']
    #allocation3 [shape = 's32[2]{0}', space=sflag, size = 0x8, scoped, tag = 'scoped memory for tpu_custom_call.1']
    #allocation4 [shape = 's32[2]{0}', space=sflag, size = 0x8, scoped, tag = 'scoped memory for tpu_custom_call.1']
    #allocation5 [shape = 'u8[4096]{0}', space=vmem, size = 0x1000, scoped, tag = 'output window, operand 0']
    %6 = vsyncpa [#allocation3], 0
    %s7 = scalar_lea.sflag [#allocation3], 1
    %8 = vsyncpa %s7, 0
    %9 = vsyncpa [#allocation4], 0
    %s10 = scalar_lea.sflag [#allocation4], 1
    %11 = vsyncpa %s10, 0
    loop: start=0, step=1, limit=6
    $region2: #{tpu_custom_call.1} parent=1 // loop_pre_header
      _
    $region3: #{tpu_custom_call.1} parent=1 // loop_header
      %s13 = sphi 0, %s17
      %p14 = scmp.ge.s32.totalorder %s13, 6
      %s20 = sphi 0, %s32
      %s21 = sphi 0, %s28
      %s22 = sphi 0, %s20
      %s23 = sphi 0, %s21
      %s24 = sphi 0, %s22
      %s25 = sphi 0, %s23
      %s39 = sphi 0, %s41
      %s42 = sphi 0, %s39
      %s43 = sphi 0, %s42
      %s59 = sphi 0, %s43
      %s67 = sphi 0, %s69
      %s70 = sphi 0, %s67
      %s71 = sphi 0, %s70
      %s87 = sphi 0, %s71
    $region4: #{tpu_custom_call.1} parent=1 // loop_header_branch
      %16 = sbr.rel (%p14) target = $region8
    $region5: #{tpu_custom_call.1} parent=1 // loop_body
      %s18 = ssub.s32 %s13, 1
      %s19 = ssub.s32 %s13, 2
      %s26 = sadd.s32 1, %s21
      %p27 = scmp.ge.s32.totalorder %s26, 4
      %s28 = scalar_select %p27, 0, %s26
      %s29 = sadd.s32 1, %s20
      %s30 = scalar_select %p27, %s29, %s20
      %p31 = scmp.ge.s32.totalorder %s30, 1
      %s32 = scalar_select %p31, 0, %s30
      %s33 = ssub.s32 3, %s21
      %s34 = ssub.s32 3, %s28
      %s35 = ssub.s32 %s33, %s34
      %s36 = ssub.s32 %s20, %s32
      %s37 = sor.u32 %s35, %s36
      %p38 = scmp.eq.s32.totalorder %s37, 0
      %s40 = sadd.s32 %s39, 1
      %s41 = scalar_select %p38, %s39, %s40
      %p44 = pneg %p38
      %p45 = scmp.eq.s32.totalorder %s13, 3
      %p46 = por %p44, %p45
      %p47 = scmp.ne.s32.totalorder %s39, %s42
      %p48 = scmp.eq.s32.totalorder %s13, 0
      %p49 = por %p47, %p48
      %p50 = scmp.ne.s32.totalorder %s39, %s42
      %p51 = scmp.eq.s32.totalorder %s18, 3
      %p52 = por %p50, %p51
      %p53 = scmp.ne.s32.totalorder %s42, %s43
      %p54 = scmp.eq.s32.totalorder %s18, 0
      %p55 = por %p53, %p54
      %p56 = scmp.ne.s32.totalorder %s42, %s43
      %p57 = scmp.eq.s32.totalorder %s19, 3
      %p58 = por %p56, %p57
      %p60 = scmp.ne.s32.totalorder %s43, %s59
      %p61 = scmp.eq.s32.totalorder %s19, 0
      %p62 = por %p60, %p61
      %s63 = ssub.s32 %s21, %s28
      %s64 = ssub.s32 %s20, %s32
      %s65 = sor.u32 %s63, %s64
      %p66 = scmp.eq.s32.totalorder %s65, 0
      %s68 = sadd.s32 %s67, 1
      %s69 = scalar_select %p66, %s67, %s68
      %p72 = pneg %p66
      %p73 = scmp.eq.s32.totalorder %s13, 3
      %p74 = por %p72, %p73
      %p75 = scmp.ne.s32.totalorder %s67, %s70
      %p76 = scmp.eq.s32.totalorder %s13, 0
      %p77 = por %p75, %p76
      %p78 = scmp.ne.s32.totalorder %s67, %s70
      %p79 = scmp.eq.s32.totalorder %s18, 3
      %p80 = por %p78, %p79
      %p81 = scmp.ne.s32.totalorder %s70, %s71
      %p82 = scmp.eq.s32.totalorder %s18, 0
      %p83 = por %p81, %p82
      %p84 = scmp.ne.s32.totalorder %s70, %s71
      %p85 = scmp.eq.s32.totalorder %s19, 3
      %p86 = por %p84, %p85
      %p88 = scmp.ne.s32.totalorder %s71, %s87
      %p89 = scmp.eq.s32.totalorder %s19, 0
      %p90 = por %p88, %p89
      %p91 = scmp.le.s32.totalorder 1, %s13
      %p92 = scmp.lt.s32.totalorder %s13, 5
      %p93 = pnand %p91, %p92
      %p94 = pneg %p93
      // Predicated region
      $region9: #{tpu_custom_call.1} parent=5 // pred_check
        _
      $region10: #{tpu_custom_call.1} parent=5 // pred_check_branch
        %96 = sbr.rel (%p93) target = $region12
      $region11: #{tpu_custom_call.1} parent=5 // pred_region
        %s97 = ssub.s32 %s13, 1
      $region12: #{tpu_custom_call.1} parent=5 // pred_fallthru
        _
      %p98 = scmp.lt.s32.totalorder %s13, 4
      // Predicated region
      $region13: #{tpu_custom_call.1} parent=5 // pred_check
        %p99 = pneg %p98
      $region14: #{tpu_custom_call.1} parent=5 // pred_check_branch
        %101 = sbr.rel (%p99) target = $region16
      $region15: #{tpu_custom_call.1} parent=5 // pred_region
        // Predicated region
        $region17: #{tpu_custom_call.1} parent=15 // pred_check
          %p102 = pneg %p49
        $region18: #{tpu_custom_call.1} parent=15 // pred_check_branch
          %104 = sbr.rel (%p102) target = $region20
        $region19: #{tpu_custom_call.1} parent=15 // pred_region
          %s105 = sand.u32 %s39, 1
          %s106 = scalar_lea.sflag [#allocation3], %s105
          %s107 = sand.u32 %s39, 1
          %s108 = smul.addr %s107, 4
          %s109 = scalar_lea.vmem [#allocation2], %s108
          %s110 = ssub.s32 3, %s21
          %s112 = ssub.s32 64, 64
          %113 = vsyncadd %s106, %s112
          %s114 = sadd.s32 %s20, %s110
          %s115 = smul.addr %s114, 32
          %s116 = scalar_lea.hbm %s0, %s115
          %s117 = sshll.u32 %s109, 4
          %s118 = int_to_ptr.vmem [resolvable:$true] %s117
          %123 = dma.hbm_to_vmem [thread:$0]  %s116, 64, %s118, %s106, 128, 32, 2
        $region20: #{tpu_custom_call.1} parent=15 // pred_fallthru
          _
      $region16: #{tpu_custom_call.1} parent=5 // pred_fallthru
        _
      %p124 = scmp.le.s32.totalorder 1, %s13
      %p125 = scmp.lt.s32.totalorder %s13, 5
      %p126 = pnand %p124, %p125
      %p127 = pneg %p126
      // Predicated region
      $region21: #{tpu_custom_call.1} parent=5 // pred_check
        _
      $region22: #{tpu_custom_call.1} parent=5 // pred_check_branch
        %129 = sbr.rel (%p126) target = $region24
      $region23: #{tpu_custom_call.1} parent=5 // pred_region
        %s130 = ssub.s32 %s13, 1
        %s131 = sand.u32 %s42, 1
        %s132 = scalar_lea.sflag [#allocation3], %s131
        %s133 = sand.u32 %s42, 1
        %s134 = smul.addr %s133, 4
        %s135 = scalar_lea.vmem [#allocation2], %s134
        // Predicated region
        $region25: #{tpu_custom_call.1} parent=23 // pred_check
          %p136 = pneg %p55
        $region26: #{tpu_custom_call.1} parent=23 // pred_check_branch
          %138 = sbr.rel (%p136) target = $region28
        $region27: #{tpu_custom_call.1} parent=23 // pred_region
          %139 = dma.done %s132, 64
        $region28: #{tpu_custom_call.1} parent=23 // pred_fallthru
          _
        %s140 = sand.u32 %s42, 1
        %s141 = scalar_lea.sflag [#allocation3], %s140
        %s142 = sand.u32 %s42, 1
        %s143 = smul.addr %s142, 4
        %s144 = scalar_lea.vmem [#allocation2], %s143
        %p145 = pneg %p55
        %p146 = pneg %p52
        %p147 = pneg %p83
        %p148 = pneg %p80
        %s149 = sand.u32 %s70, 1
        %s150 = scalar_lea.sflag [#allocation4], %s149
        %s151 = sand.u32 %s70, 1
        %s152 = smul.addr %s151, 4
        %s153 = scalar_lea.vmem [#allocation5], %s152
        %s154 = ssub.s32 3, %s23
        %v155 = vld [vmem:[%s135] sm:$0x3]
        %v156 = vld [vmem:[%s135 + $0x2] sm:$0x3]
        %157 = vst [vmem:[%s153] sm:$0x3] %v155
        %158 = vst [vmem:[%s153 + $0x2] sm:$0x3] %v156
        %s159 = sand.u32 %s70, 1
        %s160 = scalar_lea.sflag [#allocation4], %s159
        %s161 = sand.u32 %s70, 1
        %s162 = smul.addr %s161, 4
        %s163 = scalar_lea.vmem [#allocation5], %s162
        // Predicated region
        $region29: #{tpu_custom_call.1} parent=23 // pred_check
          %p164 = pneg %p80
        $region30: #{tpu_custom_call.1} parent=23 // pred_check_branch
          %166 = sbr.rel (%p164) target = $region32
        $region31: #{tpu_custom_call.1} parent=23 // pred_region
          %s168 = ssub.s32 64, 64
          %169 = vsyncadd %s160, %s168
          %s170 = sadd.s32 %s22, %s23
          %s171 = smul.addr %s170, 32
          %s172 = scalar_lea.hbm %s1, %s171
          %s173 = sshll.u32 %s163, 4
          %s174 = int_to_ptr.vmem [resolvable:$true] %s173
          %179 = dma.vmem_to_hbm [thread:$0]  %s174, 64, %s172, %s160, 32, 128, 2
        $region32: #{tpu_custom_call.1} parent=23 // pred_fallthru
          _
      $region24: #{tpu_custom_call.1} parent=5 // pred_fallthru
        _
      %p180 = scmp.le.s32.totalorder 2, %s13
      // Predicated region
      $region33: #{tpu_custom_call.1} parent=5 // pred_check
        %p181 = pneg %p180
      $region34: #{tpu_custom_call.1} parent=5 // pred_check_branch
        %183 = sbr.rel (%p181) target = $region36
      $region35: #{tpu_custom_call.1} parent=5 // pred_region
        %s184 = ssub.s32 %s13, 2
        // Predicated region
        $region37: #{tpu_custom_call.1} parent=35 // pred_check
          %p185 = pneg %p86
        $region38: #{tpu_custom_call.1} parent=35 // pred_check_branch
          %187 = sbr.rel (%p185) target = $region40
        $region39: #{tpu_custom_call.1} parent=35 // pred_region
          %s188 = sand.u32 %s71, 1
          %s189 = scalar_lea.sflag [#allocation4], %s188
          %s190 = sand.u32 %s71, 1
          %s191 = smul.addr %s190, 4
          %s192 = scalar_lea.vmem [#allocation5], %s191
          %193 = dma.done %s189, 64
        $region40: #{tpu_custom_call.1} parent=35 // pred_fallthru
          _
      $region36: #{tpu_custom_call.1} parent=5 // pred_fallthru
        _
    $region6: #{tpu_custom_call.1} parent=1 // loop_footer
      %s17 = sadd.s32 1, %s13
    $region7: #{tpu_custom_call.1} parent=1 // loop_footer_branch
      %12 = sbr.rel target = $region3
    $region8: #{tpu_custom_call.1} parent=1 // loop_exit
      _
    %194 = vsyncpa [#allocation3], 1
    %s195 = scalar_lea.sflag [#allocation3], 1
    %196 = vsyncpa %s195, 1
    %197 = vsyncpa [#allocation4], 1
    %s198 = scalar_lea.sflag [#allocation4], 1
    %199 = vsyncpa %s198, 1

</llo_original>
